<compile_context>
chip_gen: v5e
topology: v5e:2x2
jax: 0.10.0
libtpu: 0.0.40
codegen_flags: <defaults>
</compile_context>

<pallas_src>
import functools

import jax
import jax.numpy as jnp
from jax.experimental import pallas as pl
from jax.experimental.pallas import tpu as pltpu

LANES = 128            # lane width; all padded feature dims
SUBLANE = 16           # bf16 sublane packing -> batch tiles aligned to 16 rows
BIAS_ROWS = 8          # padded f32 bias block (rows 0..2 used)
W_SLAB_ROWS = 3 * LANES
NEG_INF = -1e30        # large negative bias for padded logit lanes
TB_CAP = 512           # max batch rows per grid step (review: raise 256 -> 512)


def _round_up(a, b):
    return (a + b - 1) // b * b


def _cdiv(a, b):
    return -(-a // b)


def actor_kernel(bound_ref, x_ref, w_ref, b_ref, o_ref):
    """bound_ref: SMEM (1,) f32; x_ref: (TB,128) bf16; w_ref: (384,128) bf16;
    b_ref: (8,128) f32; o_ref: (TB,128) f32."""
    x = x_ref[...]                                   # (TB, 128) bf16, zero-padded

    # Static slices into the packed bf16 weight slab (sublane-tile aligned).
    w1 = w_ref[0 * LANES:1 * LANES, :]               # (128, 128) bf16
    w2 = w_ref[1 * LANES:2 * LANES, :]               # (128, 128) bf16
    wo = w_ref[2 * LANES:3 * LANES, :]               # (128, 128) bf16
    b1 = b_ref[0:1, :]                               # (1, 128) f32
    b2 = b_ref[1:2, :]                               # (1, 128) f32
    bo = b_ref[2:3, :]                               # (1, 128) f32, padded lanes = -1e30

    # fc1 -> ReLU   (bf16 MXU operands, f32 accumulate; elementwise stays f32)
    h1 = jnp.dot(x, w1, preferred_element_type=jnp.float32) + b1
    h1 = jnp.maximum(h1, 0.0)

    # fc2 -> ReLU
    h2 = jnp.dot(h1.astype(jnp.bfloat16), w2, preferred_element_type=jnp.float32) + b2
    h2 = jnp.maximum(h2, 0.0)

    # out layer (padded lanes get ~-1e30 logits via bo padding)
    logits = jnp.dot(h2.astype(jnp.bfloat16), wo, preferred_element_type=jnp.float32) + bo

    # numerically-stable softmax over the feature (lane) axis
    m = jnp.max(logits, axis=1, keepdims=True)
    e = jnp.exp(logits - m)                          # padded lanes underflow to 0
    s = jnp.sum(e, axis=1, keepdims=True)

    # fold the action bound into the (TB, 1) reciprocal scale (EUP approx rcp)
    scale = bound_ref[0] * pl.reciprocal(s, approx=True)
    o_ref[...] = e * scale


def pack_actor_params(params, bound):
    """Build once per parameter update (hoisted out of the per-forward path).

    Returns a dict with:
      w_slab:   (384, 128) bf16 -- three lane-dense 128x128 weight blocks
      bias_blk: (8, 128)  f32  -- b1 / b2 / bo rows (bo padded lanes = -1e30)
      bound:    (1,)      f32
      n_actions: python int
    """
    n_states, n1 = params["w1"].shape
    n2 = params["w2"].shape[1]
    n_actions = params["wo"].shape[1]
    assert max(n_states, n1, n2, n_actions) <= LANES

    w = jnp.zeros((W_SLAB_ROWS, LANES), jnp.float32)
    w = w.at[0:n_states, 0:n1].set(params["w1"])
    w = w.at[LANES:LANES + n1, 0:n2].set(params["w2"])
    w = w.at[2 * LANES:2 * LANES + n2, 0:n_actions].set(params["wo"])
    w_slab = w.astype(jnp.bfloat16)                  # bf16 weights: half the DMA

    b = jnp.zeros((BIAS_ROWS, LANES), jnp.float32)   # biases stay f32
    b = b.at[0, 0:n1].set(params["b1"].reshape(-1))
    b = b.at[1, 0:n2].set(params["b2"].reshape(-1))
    b = b.at[2, :].set(NEG_INF)                      # padded logit lanes -> 0 mass
    b = b.at[2, 0:n_actions].set(params["bo"].reshape(-1))

    return {
        "w_slab": w_slab,
        "bias_blk": b,
        "bound": jnp.asarray([bound], dtype=jnp.float32),
        "n_actions": int(n_actions),
    }


def _batch_tiling(B):
    """Pick (TB, B_pad, num_blocks). 16-row aligned, <= TB_CAP rows per step,
    and >= 2 grid steps whenever possible so v7x megacore uses both TCs."""
    Bq = _round_up(max(B, 1), SUBLANE)
    if Bq >= 2 * SUBLANE:
        n_steps = max(2, _cdiv(Bq, TB_CAP))
        TB = _round_up(_cdiv(Bq, n_steps), SUBLANE)
    else:
        TB = Bq
    B_pad = _round_up(Bq, TB)
    return TB, B_pad, B_pad // TB


@functools.partial(jax.jit, static_argnames=("n_actions",))
def _actor_forward_jit(x, w_slab, bias_blk, bound_arr, n_actions):
    B, n_states = x.shape
    TB, B_pad, nb = _batch_tiling(B)

    # lane-dense, sublane-padded bf16 input (half the per-tile DMA bytes)
    x_pad = jnp.zeros((B_pad, LANES), jnp.bfloat16)
    x_pad = x_pad.at[:B, :n_states].set(x.astype(jnp.bfloat16))

    out_pad = pl.pallas_call(
        actor_kernel,
        out_shape=jax.ShapeDtypeStruct((B_pad, LANES), jnp.float32),
        grid=(nb,),
        in_specs=[
            pl.BlockSpec(memory_space=pltpu.SMEM),                  # bound scalar
            pl.BlockSpec((TB, LANES), lambda i: (i, 0)),            # x tile (bf16)
            pl.BlockSpec((W_SLAB_ROWS, LANES), lambda i: (0, 0)),   # bf16 weights (resident)
            pl.BlockSpec((BIAS_ROWS, LANES), lambda i: (0, 0)),     # f32 biases (resident)
        ],
        out_specs=pl.BlockSpec((TB, LANES), lambda i: (i, 0)),
        compiler_params=pltpu.CompilerParams(
            dimension_semantics=("parallel",)),
        cost_estimate=pl.CostEstimate(
            flops=2 * B_pad * LANES * LANES * 3,
            transcendentals=B_pad * LANES,
            bytes_accessed=(x_pad.size * 2 + W_SLAB_ROWS * LANES * 2
                            + BIAS_ROWS * LANES * 4 + B_pad * LANES * 4)),
    )(bound_arr, x_pad, w_slab, bias_blk)

    return out_pad[:B, :n_actions]


def actor_forward(x, packed):
    """x: (B, n_states) f32; packed: output of pack_actor_params()."""
    return _actor_forward_jit(x, packed["w_slab"], packed["bias_blk"],
                              packed["bound"], packed["n_actions"])


def ref_forward(x, params, bound):
    """Pure-JAX reference matching the PyTorch module."""
    h1 = jnp.maximum(x @ params["w1"] + params["b1"], 0.0)
    h2 = jnp.maximum(h1 @ params["w2"] + params["b2"], 0.0)
    logits = h2 @ params["wo"] + params["bo"]
    return jax.nn.softmax(logits, axis=1) * bound


def init_params(key, n_states, n_actions, n1=64, n2=32):
    """Weights ~ N(0, 0.1) (module init); biases ~ U(+-1/sqrt(fan_in)) (Linear default).
    Weights stored pre-transposed as (in_features, out_features); biases as (1, out)."""
    ks = jax.random.split(key, 6)

    def linear(kw, kb, fan_in, fan_out):
        w = 0.1 * jax.random.normal(kw, (fan_in, fan_out), jnp.float32)
        bnd = 1.0 / jnp.sqrt(jnp.float32(fan_in))
        b = jax.random.uniform(kb, (1, fan_out), jnp.float32, -bnd, bnd)
        return w, b

    w1, b1 = linear(ks[0], ks[1], n_states, n1)
    w2, b2 = linear(ks[2], ks[3], n1, n2)
    wo, bo = linear(ks[4], ks[5], n2, n_actions)
    return {"w1": w1, "b1": b1, "w2": w2, "b2": b2, "wo": wo, "bo": bo}


if __name__ == "__main__":
    key = jax.random.PRNGKey(0)
    B, n_states, n_actions = 4, 10, 6
    bound = float(n_actions * 2)  # a_bound defaults to n_actions * 2

    k_x, k_p = jax.random.split(key)
    x = jax.random.normal(k_x, (B, n_states), jnp.float32)
    params = init_params(k_p, n_states, n_actions)

    packed = pack_actor_params(params, bound)   # built once, reused per forward
    out = actor_forward(x, packed)
    out = jax.block_until_ready(out)
    ref = ref_forward(x, params, bound)

    assert out.shape == (B, n_actions)
    # softmax * bound -> rows sum to bound (approx rcp + bf16 MXU tolerance)
    assert jnp.allclose(jnp.sum(out, axis=1), bound, rtol=1e-2)
    assert jnp.allclose(out, ref, rtol=5e-2, atol=5e-2)

    print("KERNEL_OK")
</pallas_src>

<mosaic_0001>
module attributes {stable_mosaic.version = 11 : i64} {
  func.func @actor_kernel(%arg0: i32, %arg1: memref<1xf32, #tpu.memory_space<smem>>, %arg2: memref<16x128xbf16, #tpu.memory_space<vmem>>, %arg3: memref<384x128xbf16, #tpu.memory_space<vmem>>, %arg4: memref<8x128xf32, #tpu.memory_space<vmem>>, %arg5: memref<16x128xf32, #tpu.memory_space<vmem>>) attributes {dimension_semantics = [#tpu.dimension_semantics<parallel>], iteration_bounds = array<i64: 1>, scalar_prefetch = 0 : i64, scratch_operands = 0 : i64, tpu.core_type = #tpu.core_type<tc>, window_params = [{transform_indices = @transform_0, window_bounds = array<i64: 1>}, {transform_indices = @transform_1, window_bounds = array<i64: 16, 128>}, {pipeline_mode = #tpu.pipeline_mode<synchronous>, transform_indices = @transform_2, window_bounds = array<i64: 384, 128>}, {pipeline_mode = #tpu.pipeline_mode<synchronous>, transform_indices = @transform_3, window_bounds = array<i64: 8, 128>}, {transform_indices = @transform_4, window_bounds = array<i64: 16, 128>}]} {
    %c0 = arith.constant 0 : index
    %c0_0 = arith.constant 0 : index
    %0 = vector.load %arg2[%c0, %c0_0] : memref<16x128xbf16, #tpu.memory_space<vmem>>, vector<16x128xbf16>
    %c0_1 = arith.constant 0 : index
    %c0_2 = arith.constant 0 : index
    %1 = vector.load %arg3[%c0_1, %c0_2] : memref<384x128xbf16, #tpu.memory_space<vmem>>, vector<128x128xbf16>
    %c128 = arith.constant 128 : index
    %c0_3 = arith.constant 0 : index
    %2 = vector.load %arg3[%c128, %c0_3] : memref<384x128xbf16, #tpu.memory_space<vmem>>, vector<128x128xbf16>
    %c256 = arith.constant 256 : index
    %c0_4 = arith.constant 0 : index
    %3 = vector.load %arg3[%c256, %c0_4] : memref<384x128xbf16, #tpu.memory_space<vmem>>, vector<128x128xbf16>
    %c0_5 = arith.constant 0 : index
    %c0_6 = arith.constant 0 : index
    %4 = vector.load %arg4[%c0_5, %c0_6] : memref<8x128xf32, #tpu.memory_space<vmem>>, vector<1x128xf32>
    %c1 = arith.constant 1 : index
    %c0_7 = arith.constant 0 : index
    %5 = vector.load %arg4[%c1, %c0_7] : memref<8x128xf32, #tpu.memory_space<vmem>>, vector<1x128xf32>
    %c2 = arith.constant 2 : index
    %c0_8 = arith.constant 0 : index
    %6 = vector.load %arg4[%c2, %c0_8] : memref<8x128xf32, #tpu.memory_space<vmem>>, vector<1x128xf32>
    %cst = arith.constant dense<0.000000e+00> : vector<16x128xf32>
    %7 = tpu.matmul %0, %1, %cst {dimension_numbers = #tpu.dot_dimension_numbers<[1], [0], [0], [1], [0, 0, 1, 1], [], []>} : vector<16x128xbf16>, vector<128x128xbf16>, vector<16x128xf32> -> vector<16x128xf32>
    %8 = vector.broadcast %4 : vector<1x128xf32> to vector<16x128xf32>
    %9 = arith.addf %7, %8 : vector<16x128xf32>
    %cst_9 = arith.constant 0.000000e+00 : f32
    %10 = vector.broadcast %cst_9 : f32 to vector<16x128xf32>
    %11 = arith.maximumf %9, %10 : vector<16x128xf32>
    %12 = arith.truncf %11 : vector<16x128xf32> to vector<16x128xbf16>
    %cst_10 = arith.constant dense<0.000000e+00> : vector<16x128xf32>
    %13 = tpu.matmul %12, %2, %cst_10 {dimension_numbers = #tpu.dot_dimension_numbers<[1], [0], [0], [1], [0, 0, 1, 1], [], []>} : vector<16x128xbf16>, vector<128x128xbf16>, vector<16x128xf32> -> vector<16x128xf32>
    %14 = vector.broadcast %5 : vector<1x128xf32> to vector<16x128xf32>
    %15 = arith.addf %13, %14 : vector<16x128xf32>
    %cst_11 = arith.constant 0.000000e+00 : f32
    %16 = vector.broadcast %cst_11 : f32 to vector<16x128xf32>
    %17 = arith.maximumf %15, %16 : vector<16x128xf32>
    %18 = arith.truncf %17 : vector<16x128xf32> to vector<16x128xbf16>
    %cst_12 = arith.constant dense<0.000000e+00> : vector<16x128xf32>
    %19 = tpu.matmul %18, %3, %cst_12 {dimension_numbers = #tpu.dot_dimension_numbers<[1], [0], [0], [1], [0, 0, 1, 1], [], []>} : vector<16x128xbf16>, vector<128x128xbf16>, vector<16x128xf32> -> vector<16x128xf32>
    %20 = vector.broadcast %6 : vector<1x128xf32> to vector<16x128xf32>
    %21 = arith.addf %19, %20 : vector<16x128xf32>
    %cst_13 = arith.constant dense<0xFF800000> : vector<16xf32>
    %22 = vector.multi_reduction <maximumf>, %21, %cst_13 [1] : vector<16x128xf32> to vector<16xf32>
    %23 = vector.shape_cast %22 : vector<16xf32> to vector<16x1xf32>
    %24 = vector.broadcast %23 : vector<16x1xf32> to vector<16x128xf32>
    %25 = arith.subf %21, %24 : vector<16x128xf32>
    %26 = math.exp %25 : vector<16x128xf32>
    %cst_14 = arith.constant dense<0.000000e+00> : vector<16xf32>
    %27 = vector.multi_reduction <add>, %26, %cst_14 [1] : vector<16x128xf32> to vector<16xf32>
    %28 = vector.shape_cast %27 : vector<16xf32> to vector<16x1xf32>
    %c0_15 = arith.constant 0 : index
    %29 = memref.load %arg1[%c0_15] : memref<1xf32, #tpu.memory_space<smem>>
    %30 = tpu.reciprocal %28 {approx = true} : vector<16x1xf32> -> vector<16x1xf32>
    %31 = vector.broadcast %29 : f32 to vector<16x1xf32>
    %32 = arith.mulf %31, %30 : vector<16x1xf32>
    %33 = vector.broadcast %32 : vector<16x1xf32> to vector<16x128xf32>
    %34 = arith.mulf %26, %33 : vector<16x128xf32>
    %c0_16 = arith.constant 0 : index
    %c0_17 = arith.constant 0 : index
    %35 = vector.load %arg5[%c0_16, %c0_17] : memref<16x128xf32, #tpu.memory_space<vmem>>, vector<16x128xf32>
    tpu.vector_store %arg5[%c0_16, %c0_17], %34 {strides = array<i32>} : memref<16x128xf32, #tpu.memory_space<vmem>>, vector<16x128xf32>,
    return
  }
  func.func @transform_0(%arg0: i32) -> i32 {
    %c0_i32 = arith.constant 0 : i32
    %c0_i32_0 = arith.constant 0 : i32
    return %c0_i32 : i32
  }
  func.func @transform_1(%arg0: i32) -> (i32, i32) {
    %c0_i32 = arith.constant 0 : i32
    %c0_i32_0 = arith.constant 0 : i32
    return %arg0, %c0_i32 : i32, i32
  }
  func.func @transform_2(%arg0: i32) -> (i32, i32) {
    %c0_i32 = arith.constant 0 : i32
    %c0_i32_0 = arith.constant 0 : i32
    %c0_i32_1 = arith.constant 0 : i32
    return %c0_i32, %c0_i32_0 : i32, i32
  }
  func.func @transform_3(%arg0: i32) -> (i32, i32) {
    %c0_i32 = arith.constant 0 : i32
    %c0_i32_0 = arith.constant 0 : i32
    %c0_i32_1 = arith.constant 0 : i32
    return %c0_i32, %c0_i32_0 : i32, i32
  }
  func.func @transform_4(%arg0: i32) -> (i32, i32) {
    %c0_i32 = arith.constant 0 : i32
    %c0_i32_0 = arith.constant 0 : i32
    return %arg0, %c0_i32 : i32, i32
  }
}

</mosaic_0001>

<llo_original>
// kernel: _actor_forward_jit.1
$region0: #{_actor_forward_jit.1}
  #allocation0 [shape = 'u32[]', space=smem, size = 0x4, offset = 0x4, fixed_abs, tag = 'smem constant byte address 0x4 - core index']
  #allocation1 [shape = 'u32[72,128]{1,0:T(1,128)}', space=vmem, size = 0x9000, scoped, tag = 'internal scratch']
  #allocation2 [shape = 'f32[1]{0:T(128)S(6)}', space=smem, size = 0x200, scoped, tag = 'scoped memory for _actor_forward_jit.1']
  %s0 = inlined_call_operand.<no memory space> [shape: f32[1], index: 0, kind: input, shape index: {}]
  %s1 = inlined_call_operand.vmem [shape: bf16[16,128], index: 1, kind: input, shape index: {}]
  %s2 = inlined_call_operand.hbm [shape: bf16[384,128], index: 2, kind: input, shape index: {}]
  %s3 = inlined_call_operand.vmem [shape: f32[8,128], index: 3, kind: input, shape index: {}]
  %s4 = inlined_call_operand.vmem [shape: f32[16,128], index: 4, kind: output, shape index: {}]
  %s5 = sld [smem:[#allocation0]]
  $region30: #{_actor_forward_jit.1} parent=0
    _
  %s7 = ssub.s32 1, %s5
  %s8 = scalar_select 0, %s7, %s5
  %9 = sst [smem:[#allocation2]] %s0
  $region1: #{_actor_forward_jit.1} parent=0
    #allocation3 [shape = 'u8[98304]{0}', space=vmem, size = 0x18000, scoped, tag = 'input window, operand 2, single buffered']
    #allocation4 [shape = 's32[1]{0}', space=sflag, size = 0x4, scoped, tag = 'scoped memory for _actor_forward_jit.1']
    %10 = vsyncpa [#allocation4], 0
    // Predicated region
    $region2: #{_actor_forward_jit.1} parent=1 // pred_check
      _
    $region3: #{_actor_forward_jit.1} parent=1 // pred_check_branch
      %12 = sbr.rel (0) target = $region5
    $region4: #{_actor_forward_jit.1} parent=1 // pred_region
      _
    $region5: #{_actor_forward_jit.1} parent=1 // pred_fallthru
      _
    // Predicated region
    $region6: #{_actor_forward_jit.1} parent=1 // pred_check
      _
    $region7: #{_actor_forward_jit.1} parent=1 // pred_check_branch
      %14 = sbr.rel (0) target = $region9
    $region8: #{_actor_forward_jit.1} parent=1 // pred_region
      _
    $region9: #{_actor_forward_jit.1} parent=1 // pred_fallthru
      _
    // Predicated region
    $region10: #{_actor_forward_jit.1} parent=1 // pred_check
      _
    $region11: #{_actor_forward_jit.1} parent=1 // pred_check_branch
      %16 = sbr.rel (0) target = $region13
    $region12: #{_actor_forward_jit.1} parent=1 // pred_region
      %18 = vsyncadd [#allocation4], 0
      %s19 = sshll.u32 %s2, 4
      %s20 = int_to_ptr.hbm [resolvable:$true] %s19
      %s21 = sshll.u32 [#allocation3], 4
      %s22 = int_to_ptr.vmem [resolvable:$true] %s21
      %27 = dma.hbm_to_vmem [thread:$0]  %s20, 3072, %s22, [#allocation4], 64, 64, 4
    $region13: #{_actor_forward_jit.1} parent=1 // pred_fallthru
      _
    // Predicated region
    $region14: #{_actor_forward_jit.1} parent=1 // pred_check
      _
    $region15: #{_actor_forward_jit.1} parent=1 // pred_check_branch
      %29 = sbr.rel (0) target = $region17
    $region16: #{_actor_forward_jit.1} parent=1 // pred_region
      _
    $region17: #{_actor_forward_jit.1} parent=1 // pred_fallthru
      _
    // Predicated region
    $region18: #{_actor_forward_jit.1} parent=1 // pred_check
      _
    $region19: #{_actor_forward_jit.1} parent=1 // pred_check_branch
      %31 = sbr.rel (0) target = $region21
    $region20: #{_actor_forward_jit.1} parent=1 // pred_region
      %33 = dma.done [#allocation4], 3072
    $region21: #{_actor_forward_jit.1} parent=1 // pred_fallthru
      _
    %v34 = vld [vmem:[%s1] sm:$0xf]
    %v35 = vld [vmem:[%s1 + $0x4] sm:$0xf]
    %v36 = vld [vmem:[#allocation3] sm:$0xf]
    %v37 = vld [vmem:[#allocation3 + $0x4] sm:$0xf]
    %v38 = vld [vmem:[#allocation3 + $0x8] sm:$0xf]
    %v39 = vld [vmem:[#allocation3 + $0xc] sm:$0xf]
    %v40 = vld [vmem:[#allocation3 + $0x10] sm:$0xf]
    %v41 = vld [vmem:[#allocation3 + $0x14] sm:$0xf]
    %v42 = vld [vmem:[#allocation3 + $0x18] sm:$0xf]
    %v43 = vld [vmem:[#allocation3 + $0x1c] sm:$0xf]
    %v44 = vld [vmem:[#allocation3 + $0x20] sm:$0xf]
    %v45 = vld [vmem:[#allocation3 + $0x24] sm:$0xf]
    %v46 = vld [vmem:[#allocation3 + $0x28] sm:$0xf]
    %v47 = vld [vmem:[#allocation3 + $0x2c] sm:$0xf]
    %v48 = vld [vmem:[#allocation3 + $0x30] sm:$0xf]
    %v49 = vld [vmem:[#allocation3 + $0x34] sm:$0xf]
    %v50 = vld [vmem:[#allocation3 + $0x38] sm:$0xf]
    %v51 = vld [vmem:[#allocation3 + $0x3c] sm:$0xf]
    %v52 = vld [vmem:[#allocation3 + $0x40] sm:$0xf]
    %v53 = vld [vmem:[#allocation3 + $0x44] sm:$0xf]
    %v54 = vld [vmem:[#allocation3 + $0x48] sm:$0xf]
    %v55 = vld [vmem:[#allocation3 + $0x4c] sm:$0xf]
    %v56 = vld [vmem:[#allocation3 + $0x50] sm:$0xf]
    %v57 = vld [vmem:[#allocation3 + $0x54] sm:$0xf]
    %v58 = vld [vmem:[#allocation3 + $0x58] sm:$0xf]
    %v59 = vld [vmem:[#allocation3 + $0x5c] sm:$0xf]
    %v60 = vld [vmem:[#allocation3 + $0x60] sm:$0xf]
    %v61 = vld [vmem:[#allocation3 + $0x64] sm:$0xf]
    %v62 = vld [vmem:[#allocation3 + $0x68] sm:$0xf]
    %v63 = vld [vmem:[#allocation3 + $0x6c] sm:$0xf]
    %v64 = vld [vmem:[#allocation3 + $0x70] sm:$0xf]
    %v65 = vld [vmem:[#allocation3 + $0x74] sm:$0xf]
    %v66 = vld [vmem:[#allocation3 + $0x78] sm:$0xf]
    %v67 = vld [vmem:[#allocation3 + $0x7c] sm:$0xf]
    %v68 = vld [vmem:[#allocation3 + $0x80] sm:$0xf]
    %v69 = vld [vmem:[#allocation3 + $0x84] sm:$0xf]
    %v70 = vld [vmem:[#allocation3 + $0x88] sm:$0xf]
    %v71 = vld [vmem:[#allocation3 + $0x8c] sm:$0xf]
    %v72 = vld [vmem:[#allocation3 + $0x90] sm:$0xf]
    %v73 = vld [vmem:[#allocation3 + $0x94] sm:$0xf]
    %v74 = vld [vmem:[#allocation3 + $0x98] sm:$0xf]
    %v75 = vld [vmem:[#allocation3 + $0x9c] sm:$0xf]
    %v76 = vld [vmem:[#allocation3 + $0xa0] sm:$0xf]
    %v77 = vld [vmem:[#allocation3 + $0xa4] sm:$0xf]
    %v78 = vld [vmem:[#allocation3 + $0xa8] sm:$0xf]
    %v79 = vld [vmem:[#allocation3 + $0xac] sm:$0xf]
    %v80 = vld [vmem:[#allocation3 + $0xb0] sm:$0xf]
    %v81 = vld [vmem:[#allocation3 + $0xb4] sm:$0xf]
    %v82 = vld [vmem:[#allocation3 + $0xb8] sm:$0xf]
    %v83 = vld [vmem:[#allocation3 + $0xbc] sm:$0xf]
    %v84 = vld [vmem:[%s3] sm:$0x1]
    %v85 = vld [vmem:[%s3 + $0x1] sm:$0x1]
    %v86 = vld [vmem:[%s3 + $0x2] sm:$0x1]
    %v87 = vperm.slane %v84, 0
    %v90 = vunpack.c.l.b16 %v34
    %v91 = vunpack.c.l.b16 %v35
    %v92 = vpack.c.b16 %v91, %v90
    %v110 = vunpack.c.l.b16 %v36
    %v111 = vunpack.c.l.b16 %v37
    %v112 = vunpack.c.l.b16 %v38
    %v113 = vunpack.c.l.b16 %v39
    %v114 = vunpack.c.l.b16 %v40
    %v115 = vunpack.c.l.b16 %v41
    %v116 = vunpack.c.l.b16 %v42
    %v117 = vunpack.c.l.b16 %v43
    %v118 = vunpack.c.l.b16 %v44
    %v119 = vunpack.c.l.b16 %v45
    %v120 = vunpack.c.l.b16 %v46
    %v121 = vunpack.c.l.b16 %v47
    %v122 = vunpack.c.l.b16 %v48
    %v123 = vunpack.c.l.b16 %v49
    %v124 = vunpack.c.l.b16 %v50
    %v125 = vunpack.c.l.b16 %v51
    %v126 = vpack.c.b16 %v111, %v110
    %v127 = vpack.c.b16 %v113, %v112
    %v128 = vpack.c.b16 %v115, %v114
    %v129 = vpack.c.b16 %v117, %v116
    %v130 = vpack.c.b16 %v119, %v118
    %v131 = vpack.c.b16 %v121, %v120
    %v132 = vpack.c.b16 %v123, %v122
    %v133 = vpack.c.b16 %v125, %v124
    %142 = vmatpush.bf16.msra.mxu0 %v133
    %143 = vmatpush.bf16.msra.mxu0 %v132
    %144 = vmatpush.bf16.msra.mxu0 %v131
    %145 = vmatpush.bf16.msra.mxu0 %v130
    %146 = vmatpush.bf16.msra.mxu0 %v129
    %147 = vmatpush.bf16.msra.mxu0 %v128
    %148 = vmatpush.bf16.msra.mxu0 %v127
    %149 = vmatpush.bf16.msra.mxu0 %v126
    %150 = vmatmul.bf16.gmra.mxu0 %v92
    %v151 = vpop.f32.mrf.mxu0
    %v152 = vadd.f32 %v87, %v151
    %v153 = vpop.f32.mrf.mxu0
    %v154 = vadd.f32 %v87, %v153
    %155 = vdwg.mxu0
    %v156 = vmax.f32 %v152, 0.0
    %v157 = vmax.f32 %v154, 0.0
    %v158 = vpack.c.bf16 %v157, %v156
    %v159 = vperm.slane %v85, 0
    %v176 = vunpack.c.l.b16 %v52
    %v177 = vunpack.c.l.b16 %v53
    %v178 = vunpack.c.l.b16 %v54
    %v179 = vunpack.c.l.b16 %v55
    %v180 = vunpack.c.l.b16 %v56
    %v181 = vunpack.c.l.b16 %v57
    %v182 = vunpack.c.l.b16 %v58
    %v183 = vunpack.c.l.b16 %v59
    %v184 = vunpack.c.l.b16 %v60
    %v185 = vunpack.c.l.b16 %v61
    %v186 = vunpack.c.l.b16 %v62
    %v187 = vunpack.c.l.b16 %v63
    %v188 = vunpack.c.l.b16 %v64
    %v189 = vunpack.c.l.b16 %v65
    %v190 = vunpack.c.l.b16 %v66
    %v191 = vunpack.c.l.b16 %v67
    %v192 = vpack.c.b16 %v177, %v176
    %v193 = vpack.c.b16 %v179, %v178
    %v194 = vpack.c.b16 %v181, %v180
    %v195 = vpack.c.b16 %v183, %v182
    %v196 = vpack.c.b16 %v185, %v184
    %v197 = vpack.c.b16 %v187, %v186
    %v198 = vpack.c.b16 %v189, %v188
    %v199 = vpack.c.b16 %v191, %v190
    %208 = vmatpush.bf16.msra.mxu0 %v199
    %209 = vmatpush.bf16.msra.mxu0 %v198
    %210 = vmatpush.bf16.msra.mxu0 %v197
    %211 = vmatpush.bf16.msra.mxu0 %v196
    %212 = vmatpush.bf16.msra.mxu0 %v195
    %213 = vmatpush.bf16.msra.mxu0 %v194
    %214 = vmatpush.bf16.msra.mxu0 %v193
    %215 = vmatpush.bf16.msra.mxu0 %v192
    %216 = vmatmul.bf16.gmra.mxu0 %v158
    %v217 = vpop.f32.mrf.mxu0
    %v218 = vadd.f32 %v159, %v217
    %v219 = vpop.f32.mrf.mxu0
    %v220 = vadd.f32 %v159, %v219
    %221 = vdwg.mxu0
    %v222 = vmax.f32 %v218, 0.0
    %v223 = vmax.f32 %v220, 0.0
    %v224 = vpack.c.bf16 %v223, %v222
    %v225 = vperm.slane %v86, 0
    %v242 = vunpack.c.l.b16 %v68
    %v243 = vunpack.c.l.b16 %v69
    %v244 = vunpack.c.l.b16 %v70
    %v245 = vunpack.c.l.b16 %v71
    %v246 = vunpack.c.l.b16 %v72
    %v247 = vunpack.c.l.b16 %v73
    %v248 = vunpack.c.l.b16 %v74
    %v249 = vunpack.c.l.b16 %v75
    %v250 = vunpack.c.l.b16 %v76
    %v251 = vunpack.c.l.b16 %v77
    %v252 = vunpack.c.l.b16 %v78
    %v253 = vunpack.c.l.b16 %v79
    %v254 = vunpack.c.l.b16 %v80
    %v255 = vunpack.c.l.b16 %v81
    %v256 = vunpack.c.l.b16 %v82
    %v257 = vunpack.c.l.b16 %v83
    %v258 = vpack.c.b16 %v243, %v242
    %v259 = vpack.c.b16 %v245, %v244
    %v260 = vpack.c.b16 %v247, %v246
    %v261 = vpack.c.b16 %v249, %v248
    %v262 = vpack.c.b16 %v251, %v250
    %v263 = vpack.c.b16 %v253, %v252
    %v264 = vpack.c.b16 %v255, %v254
    %v265 = vpack.c.b16 %v257, %v256
    %274 = vmatpush.bf16.msra.mxu0 %v265
    %275 = vmatpush.bf16.msra.mxu0 %v264
    %276 = vmatpush.bf16.msra.mxu0 %v263
    %277 = vmatpush.bf16.msra.mxu0 %v262
    %278 = vmatpush.bf16.msra.mxu0 %v261
    %279 = vmatpush.bf16.msra.mxu0 %v260
    %280 = vmatpush.bf16.msra.mxu0 %v259
    %281 = vmatpush.bf16.msra.mxu0 %v258
    %282 = vmatmul.bf16.gmra.mxu0 %v224
    %v283 = vpop.f32.mrf.mxu0
    %v284 = vadd.f32 %v225, %v283
    %v285 = vpop.f32.mrf.mxu0
    %v286 = vadd.f32 %v225, %v285
    %287 = vdwg.mxu0
    %288 = vmax.xlane.f32.xlu0 %v284
    %v289 = vpop.xlane.xlu0 %288
    %290 = vmax.xlane.f32.xlu0 %v286
    %v291 = vpop.xlane.xlu0 %290
    %v292 = vsub.f32 %v284, %v289
    %v293 = vsub.f32 %v286, %v291
    %v294 = vmul.f32 %v292, 1.442695
    %v295 = vpow.pop %v294
    %v296 = vmul.f32 %v293, 1.442695
    %v297 = vpow.pop %v296
    %298 = vadd.xlane.f32.xlu0 %v295
    %v299 = vpop.xlane.xlu0 %298
    %300 = vadd.xlane.f32.xlu0 %v297
    %v301 = vpop.xlane.xlu0 %300
    %s302 = sld [smem:[#allocation2]]
    %v303 = vrcp.pop %v299
    %v304 = vrcp.pop %v301
    %v305 = vstv %s302
    %v306 = vmul.f32 %v305, %v303
    %v307 = vmul.f32 %v305, %v304
    %v308 = vmul.f32 %v295, %v306
    %v309 = vmul.f32 %v297, %v307
    %310 = vst [vmem:[%s4] sm:$0xff] %v308
    %311 = vst [vmem:[%s4 + $0x8] sm:$0xff] %v309
    // Predicated region
    $region22: #{_actor_forward_jit.1} parent=1 // pred_check
      _
    $region23: #{_actor_forward_jit.1} parent=1 // pred_check_branch
      %313 = sbr.rel (0) target = $region25
    $region24: #{_actor_forward_jit.1} parent=1 // pred_region
      _
    $region25: #{_actor_forward_jit.1} parent=1 // pred_fallthru
      _
    // Predicated region
    $region26: #{_actor_forward_jit.1} parent=1 // pred_check
      _
    $region27: #{_actor_forward_jit.1} parent=1 // pred_check_branch
      %315 = sbr.rel (0) target = $region29
    $region28: #{_actor_forward_jit.1} parent=1 // pred_region
      _
    $region29: #{_actor_forward_jit.1} parent=1 // pred_fallthru
      _
    %316 = vsyncpa [#allocation4], 1

</llo_original>
